<compile_context>
chip_gen: v7x
topology: tpu7x:2x2x1
jax: 0.10.0
libtpu: 0.0.40
codegen_flags: <defaults>
</compile_context>

<pallas_src>
import jax
import jax.numpy as jnp
from jax.experimental import pallas as pl
from jax.experimental.pallas import tpu as pltpu

EPS = 1.1920929e-07            # torch.finfo(float32).eps (F.rms_norm default)
HIGHEST = jax.lax.Precision.HIGHEST
ATTN_SCALE = 0.12


def _rmsnorm(x):
    ms = jnp.mean(x * x, axis=-1, keepdims=True)
    return x * jax.lax.rsqrt(ms + EPS)


def _rope(t, cos, sin):
    """Rotate-half rotary on a 2-D (rows, hd) tile via XLU roll.
    cos = [cos|cos], sin = [sin|-sin] (sign folded)."""
    half = t.shape[-1] // 2
    return t * cos + pltpu.roll(t, half, axis=1) * sin


def _tile(n, target):
    """Largest multiple-of-8 divisor of n that is <= target (fallback: n)."""
    for c in range(min(target, n), 7, -1):
        if n % c == 0 and c % 8 == 0:
            return c
    return n


def _row_target():
    # 512-row tiles on 128 MiB-VMEM parts (v5e/v6e), 256 where VMEM is tighter
    # (v7x: 64 MiB per TensorCore).
    try:
        if pltpu.get_tpu_info().vmem_capacity_bytes >= 96 * 1024 * 1024:
            return 512
    except Exception:
        pass
    return 256


# ----------------------------------------------------------------------------
# Kernel 1: residual mix + rms_norm + fused QKV projection (row-tiled)
#   xmix = lam0*x + lam1*x0 ;  qkv = rms_norm(xmix) @ Wqkv^T   (qkv stored bf16)
# ----------------------------------------------------------------------------
def mix_norm_qkv_kernel(lam_ref, x_ref, x0_ref, w_ref, xmix_ref, qkv_ref):
    xm = lam_ref[0] * x_ref[...] + lam_ref[1] * x0_ref[...]   # f32
    xmix_ref[...] = xm
    xn = _rmsnorm(xm).astype(jnp.bfloat16)                    # bf16 MXU path
    qkv_ref[...] = jnp.dot(
        xn, w_ref[...], preferred_element_type=jnp.float32).astype(jnp.bfloat16)


# ----------------------------------------------------------------------------
# Kernel 2: flash-style attention, one (batch, head, q-tile, kv-tile) per step
# ----------------------------------------------------------------------------
def _attn_body(lam_ref, q_ref, k_ref, v_ref, ve_ref,
               cq_ref, sq_ref, ck_ref, sk_ref, o_ref,
               q_sc, m_sc, l_sc, acc_sc):
    ki = pl.program_id(3)
    l0 = lam_ref[0]
    l1 = lam_ref[1]

    @pl.when(ki == 0)
    def _():
        # qk-rmsnorm + rotary on the query tile once per (b, h, qi); the 0.12
        # scale is folded into q (O(tq*hd)) instead of the scores (O(tq*tk)).
        qh = _rope(_rmsnorm(q_ref[...].astype(jnp.float32)),
                   cq_ref[...], sq_ref[...])
        q_sc[...] = (qh * ATTN_SCALE).astype(jnp.bfloat16)
        m_sc[...] = jnp.full_like(m_sc, -jnp.inf)
        l_sc[...] = jnp.zeros_like(l_sc)
        acc_sc[...] = jnp.zeros_like(acc_sc)

    kh = _rope(_rmsnorm(k_ref[...].astype(jnp.float32)),
               ck_ref[...], sk_ref[...]).astype(jnp.bfloat16)
    vh = l0 * v_ref[...].astype(jnp.float32)
    if ve_ref is not None:
        vh = vh + l1 * ve_ref[...].astype(jnp.float32)
    vh = vh.astype(jnp.bfloat16)

    # q @ k^T without materializing a transpose (NT matmul on the MXU).
    s = jax.lax.dot_general(q_sc[...], kh, (((1,), (1,)), ((), ())),
                            preferred_element_type=jnp.float32)
    m_new = jnp.maximum(m_sc[...], jnp.max(s, axis=-1, keepdims=True))
    alpha = jnp.exp(m_sc[...] - m_new)
    p = jnp.exp(s - m_new)
    l_sc[...] = alpha * l_sc[...] + jnp.sum(p, axis=-1, keepdims=True)
    acc_sc[...] = alpha * acc_sc[...] + jnp.dot(
        p.astype(jnp.bfloat16), vh, preferred_element_type=jnp.float32)
    m_sc[...] = m_new

    @pl.when(ki == pl.num_programs(3) - 1)
    def _():
        # Normalize the (tq, hd) accumulator, not the (tq, tk) score matrix.
        o_ref[...] = (acc_sc[...] *
                      pl.reciprocal(l_sc[...], approx=True)).astype(o_ref.dtype)


def _attn_kernel_ve(lam_ref, q_ref, k_ref, v_ref, ve_ref,
                    cq_ref, sq_ref, ck_ref, sk_ref, o_ref, *scratch):
    _attn_body(lam_ref, q_ref, k_ref, v_ref, ve_ref,
               cq_ref, sq_ref, ck_ref, sk_ref, o_ref, *scratch)


def _attn_kernel_no_ve(lam_ref, q_ref, k_ref, v_ref,
                       cq_ref, sq_ref, ck_ref, sk_ref, o_ref, *scratch):
    # ve is None in the module: v = lambdas[0] * v (no zeros materialized).
    _attn_body(lam_ref, q_ref, k_ref, v_ref, None,
               cq_ref, sq_ref, ck_ref, sk_ref, o_ref, *scratch)


# ----------------------------------------------------------------------------
# Kernel 3 (fused): attention output projection + residual + rms_norm + MLP
#   x2 = xmix + y @ Wo^T ;  out = x2 + relu(rms_norm(x2)@Wfc^T)^2 @ Wp^T
# ----------------------------------------------------------------------------
def proj_mlp_kernel(y_ref, wo_ref, res_ref, wfc_ref, wmp_ref, o_ref):
    attn = jnp.dot(y_ref[...], wo_ref[...], preferred_element_type=jnp.float32)
    x2 = res_ref[...] + attn
    xn = _rmsnorm(x2).astype(jnp.bfloat16)
    h = jnp.dot(xn, wfc_ref[...], preferred_element_type=jnp.float32)
    h = jnp.maximum(h, 0.0)
    h = (h * h).astype(jnp.bfloat16)
    o_ref[...] = x2 + jnp.dot(h, wmp_ref[...], preferred_element_type=jnp.float32)


# ----------------------------------------------------------------------------
# Wrapper
# ----------------------------------------------------------------------------
def block_forward(x, ve, x0, params):
    B, T, dim = x.shape
    H = params["num_heads"]
    hd = params["head_dim"]
    hdim = H * hd
    N = B * T
    has_ve = ve is not None
    assert hd % 128 == 0, "head_dim must be a multiple of the 128-lane width"

    xf = x.reshape(N, dim)
    x0f = x0.reshape(N, dim)

    rt = _tile(N, _row_target())
    row_grid = (N // rt,)
    row_params = pltpu.CompilerParams(
        dimension_semantics=("parallel",),
        vmem_limit_bytes=48 * 1024 * 1024)

    def const_spec(shape):
        # Weight blocks whose index_map is constant across the grid:
        # single-buffer them so they don't double their VMEM footprint.
        return pl.BlockSpec(shape, lambda i: (0, 0),
                            pipeline_mode=pl.Buffered(1))

    # --- kernel 1: mix + norm + qkv projection ------------------------------
    ce_qkv = pl.CostEstimate(
        flops=int(2 * N * dim * 3 * hdim + 8 * N * dim),
        transcendentals=int(N),
        bytes_accessed=int(2 * N * dim * 4 + dim * 3 * hdim * 2
                           + N * dim * 4 + N * 3 * hdim * 2))
    xmix, qkv = pl.pallas_call(
        mix_norm_qkv_kernel,
        grid=row_grid,
        out_shape=(jax.ShapeDtypeStruct((N, dim), jnp.float32),
                   jax.ShapeDtypeStruct((N, 3 * hdim), jnp.bfloat16)),
        in_specs=[
            pl.BlockSpec(memory_space=pltpu.MemorySpace.SMEM),
            pl.BlockSpec((rt, dim), lambda i: (i, 0)),
            pl.BlockSpec((rt, dim), lambda i: (i, 0)),
            const_spec((dim, 3 * hdim)),
        ],
        out_specs=(pl.BlockSpec((rt, dim), lambda i: (i, 0)),
                   pl.BlockSpec((rt, 3 * hdim), lambda i: (i, 0))),
        compiler_params=row_params,
        cost_estimate=ce_qkv,
    )(params["block_lambdas"], xf, x0f, params["qkv_w_t"])

    # --- glue: only free row-major reshapes (no transposes) -----------------
    qkv3 = qkv.reshape(B, T, 3 * hdim)
    cosf = params["rot_cos_full"][:T]            # (T, hd)  = [cos | cos]
    sinf = params["rot_sin_full"][:T]            # (T, hd)  = [sin | -sin]

    tq = _tile(T, 256)
    tk = _tile(T, 256)
    nq, nk = T // tq, T // tk

    # Dense lane-aligned (tile, hd) blocks per head; head selection is a lane
    # block index (q: h, k: H+h, v: 2H+h) — no sublane-strided gathers.
    q_spec = pl.BlockSpec((None, tq, hd), lambda b, h, qi, ki: (b, qi, h))
    k_spec = pl.BlockSpec((None, tk, hd), lambda b, h, qi, ki: (b, ki, H + h))
    v_spec = pl.BlockSpec((None, tk, hd), lambda b, h, qi, ki: (b, ki, 2 * H + h))
    cq_spec = pl.BlockSpec((tq, hd), lambda b, h, qi, ki: (qi, 0))
    ck_spec = pl.BlockSpec((tk, hd), lambda b, h, qi, ki: (ki, 0))
    o_spec = pl.BlockSpec((None, tq, hd), lambda b, h, qi, ki: (b, qi, h))

    in_specs = [pl.BlockSpec(memory_space=pltpu.MemorySpace.SMEM),
                q_spec, k_spec, v_spec]
    operands = [params["attn_lambdas"], qkv3, qkv3, qkv3]
    if has_ve:
        ve3 = ve.reshape(B, T, hdim)
        if ve3.dtype != jnp.bfloat16:            # upstream should supply bf16
            ve3 = ve3.astype(jnp.bfloat16)
        in_specs.append(pl.BlockSpec((None, tk, hd),
                                     lambda b, h, qi, ki: (b, ki, h)))
        operands.append(ve3)
    in_specs += [cq_spec, cq_spec, ck_spec, ck_spec]
    operands += [cosf, sinf, cosf, sinf]

    attn_kernel = _attn_kernel_ve if has_ve else _attn_kernel_no_ve
    ce_attn = pl.CostEstimate(
        flops=int(4 * B * H * T * T * hd + 16 * B * T * hdim),
        transcendentals=int(B * H * T * (T + 2)),
        bytes_accessed=int((4 + (1 if has_ve else 0)) * B * T * hdim * 2
                           + 4 * T * hd * 4))
    y = pl.pallas_call(
        attn_kernel,
        grid=(B, H, nq, nk),
        out_shape=jax.ShapeDtypeStruct((B, T, hdim), jnp.bfloat16),
        in_specs=in_specs,
        out_specs=o_spec,
        scratch_shapes=[pltpu.VMEM((tq, hd), jnp.bfloat16),   # q (norm+rope+scale)
                        pltpu.VMEM((tq, 1), jnp.float32),     # m
                        pltpu.VMEM((tq, 1), jnp.float32),     # l
                        pltpu.VMEM((tq, hd), jnp.float32)],   # acc
        compiler_params=pltpu.CompilerParams(
            dimension_semantics=("parallel", "parallel", "parallel", "arbitrary"),
            vmem_limit_bytes=48 * 1024 * 1024),
        cost_estimate=ce_attn,
    )(*operands)

    y2 = y.reshape(N, hdim)                      # free reshape

    # --- kernel 3: fused out-proj + residual + rmsnorm + MLP + residual -----
    ce_mlp = pl.CostEstimate(
        flops=int(2 * N * (hdim * dim + 8 * dim * dim) + 10 * N * dim),
        transcendentals=int(N),
        bytes_accessed=int(N * hdim * 2 + hdim * dim * 2 + N * dim * 4
                           + 8 * dim * dim * 2 + N * dim * 4))
    out = pl.pallas_call(
        proj_mlp_kernel,
        grid=row_grid,
        out_shape=jax.ShapeDtypeStruct((N, dim), jnp.float32),
        in_specs=[
            pl.BlockSpec((rt, hdim), lambda i: (i, 0)),
            const_spec((hdim, dim)),
            pl.BlockSpec((rt, dim), lambda i: (i, 0)),
            const_spec((dim, 4 * dim)),
            const_spec((4 * dim, dim)),
        ],
        out_specs=pl.BlockSpec((rt, dim), lambda i: (i, 0)),
        compiler_params=row_params,
        cost_estimate=ce_mlp,
    )(y2, params["attn_proj_w_t"], xmix,
      params["mlp_fc_w_t"], params["mlp_proj_w_t"])

    return out.reshape(B, T, dim)


# ----------------------------------------------------------------------------
# Pure-JAX reference (all-f32, HIGHEST precision) for correctness checking
# ----------------------------------------------------------------------------
def block_reference(x, ve, x0, p):
    B, T, dim = x.shape
    H, hd = p["num_heads"], p["head_dim"]
    hdim = H * hd

    def rms(t):
        return t * jax.lax.rsqrt(jnp.mean(t * t, axis=-1, keepdims=True) + EPS)

    lam = p["block_lambdas"]
    x1 = lam[0] * x + lam[1] * x0

    xn = rms(x1)
    qkv = jnp.einsum("btd,od->bto", xn, p["qkv_w"].reshape(3 * hdim, dim),
                     precision=HIGHEST).reshape(B, T, 3, H, hd)
    q, k, v = qkv[:, :, 0], qkv[:, :, 1], qkv[:, :, 2]
    q, k = rms(q), rms(k)

    cos = p["rot_cos"][:T][None, :, None, :]
    sin = p["rot_sin"][:T][None, :, None, :]

    def rot(t):
        t1, t2 = t[..., :hd // 2], t[..., hd // 2:]
        return jnp.concatenate([t1 * cos + t2 * sin, -t1 * sin + t2 * cos], -1)

    q, k = rot(q), rot(k)

    al = p["attn_lambdas"]
    if ve is None:
        v = al[0] * v
    else:
        v = al[0] * v + al[1] * ve.reshape(B, T, H, hd)

    qh, kh, vh = (t.transpose(0, 2, 1, 3) for t in (q, k, v))
    s = jnp.einsum("bhqd,bhkd->bhqk", qh, kh, precision=HIGHEST) * 0.12
    pa = jax.nn.softmax(s, axis=-1)
    y = jnp.einsum("bhqk,bhkd->bhqd", pa, vh, precision=HIGHEST)
    y = y.transpose(0, 2, 1, 3).reshape(B, T, hdim)
    y = jnp.einsum("bto,do->btd", y, p["attn_proj_w"], precision=HIGHEST)

    x2 = x1 + y
    h = jnp.einsum("btd,hd->bth", rms(x2), p["mlp_fc_w"], precision=HIGHEST)
    h = jnp.maximum(h, 0.0)
    h = h * h
    m = jnp.einsum("bth,dh->btd", h, p["mlp_proj_w"], precision=HIGHEST)
    return x2 + m


# ----------------------------------------------------------------------------
def make_params(dim, num_heads, head_dim, max_seq_len, key):
    hdim = num_heads * head_dim
    ks = jax.random.split(key, 4)

    def ub(d):
        return (3.0 ** 0.5) * 0.5 * d ** (-0.5)

    b = ub(dim)
    qkv_w = jax.random.uniform(ks[0], (3, hdim, dim), jnp.float32, -b, b)
    bp = ub(hdim)
    # TODO(synk): PyTorch zero-inits c_proj weights; random init used here so
    # the kernels do nontrivial work (shapes match __init__ exactly).
    attn_proj_w = jax.random.uniform(ks[1], (dim, hdim), jnp.float32, -bp, bp)
    bf = ub(dim)
    mlp_fc_w = jax.random.uniform(ks[2], (4 * dim, dim), jnp.float32, -bf, bf)
    bm = ub(4 * dim)
    mlp_proj_w = jax.random.uniform(ks[3], (dim, 4 * dim), jnp.float32, -bm, bm)

    # Rotary tables (head_dim // 4 nonzero freqs + head_dim // 4 zeros).
    freqs = (1.0 / 1024.0) ** jnp.linspace(0.0, 1.0, head_dim // 4)
    freqs = jnp.concatenate([freqs, jnp.zeros(head_dim // 4)], axis=0)
    t = jnp.arange(max_seq_len, dtype=jnp.float32)
    theta = t[:, None] * freqs[None, :]                     # (S, hd//2)
    cos = jnp.cos(theta).astype(jnp.float32)
    sin = jnp.sin(theta).astype(jnp.float32)

    return dict(
        num_heads=num_heads, head_dim=head_dim,
        # f32 originals (reference path)
        qkv_w=qkv_w, attn_proj_w=attn_proj_w,
        mlp_fc_w=mlp_fc_w, mlp_proj_w=mlp_proj_w,
        attn_lambdas=jnp.array([0.5, 0.5], jnp.float32),
        block_lambdas=jnp.array([1.0, 0.0], jnp.float32),
        rot_cos=cos, rot_sin=sin,
        # kernel-side copies: pre-transposed, bf16 (native MXU path)
        qkv_w_t=qkv_w.reshape(3 * hdim, dim).T.astype(jnp.bfloat16),
        attn_proj_w_t=attn_proj_w.T.astype(jnp.bfloat16),
        mlp_fc_w_t=mlp_fc_w.T.astype(jnp.bfloat16),
        mlp_proj_w_t=mlp_proj_w.T.astype(jnp.bfloat16),
        # full lane-width rotary tables, sign folded into the sin half
        rot_cos_full=jnp.concatenate([cos, cos], axis=1),   # (S, hd)
        rot_sin_full=jnp.concatenate([sin, -sin], axis=1),  # (S, hd)
    )


if __name__ == "__main__":
    B, T, dim = 2, 16, 64
    num_heads, head_dim, max_seq_len = 2, 128, 32
    hdim = num_heads * head_dim

    key = jax.random.PRNGKey(0)
    kx, kve, kx0, kp = jax.random.split(key, 4)
    x = jax.random.normal(kx, (B, T, dim), jnp.float32)
    x0 = jax.random.normal(kx0, (B, T, dim), jnp.float32)
    ve = jax.random.normal(kve, (B, T, hdim), jnp.float32)
    params = make_params(dim, num_heads, head_dim, max_seq_len, kp)

    out = jax.block_until_ready(block_forward(x, ve, x0, params))
    ref = jax.block_until_ready(block_reference(x, ve, x0, params))

    assert out.shape == (B, T, dim)
    max_err = float(jnp.max(jnp.abs(out - ref)))
    # Kernels use bf16 MXU matmuls, a bf16 qkv intermediate, and an
    # approx-reciprocal softmax vs an all-f32 HIGHEST-precision reference,
    # so the tolerance is loosened accordingly.
    assert jnp.allclose(out, ref, atol=1e-1, rtol=1e-1), max_err
    print("KERNEL_OK")
</pallas_src>

<mosaic_0001>
module attributes {stable_mosaic.version = 11 : i64} {
  func.func @mix_norm_qkv_kernel(%arg0: i32, %arg1: memref<2xf32, #tpu.memory_space<smem>>, %arg2: memref<32x64xf32, #tpu.memory_space<vmem>>, %arg3: memref<32x64xf32, #tpu.memory_space<vmem>>, %arg4: memref<64x768xbf16, #tpu.memory_space<vmem>>, %arg5: memref<32x64xf32, #tpu.memory_space<vmem>>, %arg6: memref<32x768xbf16, #tpu.memory_space<vmem>>) attributes {dimension_semantics = [#tpu.dimension_semantics<parallel>], iteration_bounds = array<i64: 1>, scalar_prefetch = 0 : i64, scratch_operands = 0 : i64, tpu.core_type = #tpu.core_type<tc>, window_params = [{transform_indices = @transform_0, window_bounds = array<i64: 2>}, {transform_indices = @transform_1, window_bounds = array<i64: 32, 64>}, {transform_indices = @transform_2, window_bounds = array<i64: 32, 64>}, {pipeline_mode = #tpu.pipeline_mode<synchronous>, transform_indices = @transform_3, window_bounds = array<i64: 64, 768>}, {transform_indices = @transform_4, window_bounds = array<i64: 32, 64>}, {transform_indices = @transform_5, window_bounds = array<i64: 32, 768>}]} {
    %c0 = arith.constant 0 : index
    %0 = memref.load %arg1[%c0] : memref<2xf32, #tpu.memory_space<smem>>
    %c0_0 = arith.constant 0 : index
    %c0_1 = arith.constant 0 : index
    %1 = vector.load %arg2[%c0_0, %c0_1] : memref<32x64xf32, #tpu.memory_space<vmem>>, vector<32x64xf32>
    %2 = vector.broadcast %0 : f32 to vector<32x64xf32>
    %3 = arith.mulf %2, %1 : vector<32x64xf32>
    %c1 = arith.constant 1 : index
    %4 = memref.load %arg1[%c1] : memref<2xf32, #tpu.memory_space<smem>>
    %c0_2 = arith.constant 0 : index
    %c0_3 = arith.constant 0 : index
    %5 = vector.load %arg3[%c0_2, %c0_3] : memref<32x64xf32, #tpu.memory_space<vmem>>, vector<32x64xf32>
    %6 = vector.broadcast %4 : f32 to vector<32x64xf32>
    %7 = arith.mulf %6, %5 : vector<32x64xf32>
    %8 = arith.addf %3, %7 : vector<32x64xf32>
    %c0_4 = arith.constant 0 : index
    %c0_5 = arith.constant 0 : index
    %9 = vector.load %arg5[%c0_4, %c0_5] : memref<32x64xf32, #tpu.memory_space<vmem>>, vector<32x64xf32>
    tpu.vector_store %arg5[%c0_4, %c0_5], %8 {strides = array<i32>} : memref<32x64xf32, #tpu.memory_space<vmem>>, vector<32x64xf32>,
    %10 = arith.mulf %8, %8 : vector<32x64xf32>
    %cst = arith.constant dense<0.000000e+00> : vector<32xf32>
    %11 = vector.multi_reduction <add>, %10, %cst [1] : vector<32x64xf32> to vector<32xf32>
    %12 = vector.shape_cast %11 : vector<32xf32> to vector<32x1xf32>
    %cst_6 = arith.constant 6.400000e+01 : f32
    %13 = vector.broadcast %cst_6 : f32 to vector<32x1xf32>
    %14 = arith.divf %12, %13 : vector<32x1xf32>
    %cst_7 = arith.constant 1.1920929E-7 : f32
    %15 = vector.broadcast %cst_7 : f32 to vector<32x1xf32>
    %16 = arith.addf %14, %15 : vector<32x1xf32>
    %17 = math.rsqrt %16 : vector<32x1xf32>
    %18 = vector.broadcast %17 : vector<32x1xf32> to vector<32x64xf32>
    %19 = arith.mulf %8, %18 : vector<32x64xf32>
    %20 = arith.truncf %19 : vector<32x64xf32> to vector<32x64xbf16>
    %c0_8 = arith.constant 0 : index
    %c0_9 = arith.constant 0 : index
    %21 = vector.load %arg4[%c0_8, %c0_9] : memref<64x768xbf16, #tpu.memory_space<vmem>>, vector<64x768xbf16>
    %cst_10 = arith.constant dense<0.000000e+00> : vector<32x768xf32>
    %22 = tpu.matmul %20, %21, %cst_10 {dimension_numbers = #tpu.dot_dimension_numbers<[1], [0], [0], [1], [0, 0, 1, 1], [], []>} : vector<32x64xbf16>, vector<64x768xbf16>, vector<32x768xf32> -> vector<32x768xf32>
    %23 = arith.truncf %22 : vector<32x768xf32> to vector<32x768xbf16>
    %c0_11 = arith.constant 0 : index
    %c0_12 = arith.constant 0 : index
    %24 = vector.load %arg6[%c0_11, %c0_12] : memref<32x768xbf16, #tpu.memory_space<vmem>>, vector<32x768xbf16>
    tpu.vector_store %arg6[%c0_11, %c0_12], %23 {strides = array<i32>} : memref<32x768xbf16, #tpu.memory_space<vmem>>, vector<32x768xbf16>,
    return
  }
  func.func @transform_0(%arg0: i32) -> i32 {
    %c0_i32 = arith.constant 0 : i32
    %c0_i32_0 = arith.constant 0 : i32
    return %c0_i32 : i32
  }
  func.func @transform_1(%arg0: i32) -> (i32, i32) {
    %c0_i32 = arith.constant 0 : i32
    %c0_i32_0 = arith.constant 0 : i32
    return %arg0, %c0_i32 : i32, i32
  }
  func.func @transform_2(%arg0: i32) -> (i32, i32) {
    %c0_i32 = arith.constant 0 : i32
    %c0_i32_0 = arith.constant 0 : i32
    return %arg0, %c0_i32 : i32, i32
  }
  func.func @transform_3(%arg0: i32) -> (i32, i32) {
    %c0_i32 = arith.constant 0 : i32
    %c0_i32_0 = arith.constant 0 : i32
    %c0_i32_1 = arith.constant 0 : i32
    return %c0_i32, %c0_i32_0 : i32, i32
  }
  func.func @transform_4(%arg0: i32) -> (i32, i32) {
    %c0_i32 = arith.constant 0 : i32
    %c0_i32_0 = arith.constant 0 : i32
    return %arg0, %c0_i32 : i32, i32
  }
  func.func @transform_5(%arg0: i32) -> (i32, i32) {
    %c0_i32 = arith.constant 0 : i32
    %c0_i32_0 = arith.constant 0 : i32
    return %arg0, %c0_i32 : i32, i32
  }
}

</mosaic_0001>

<llo_original>
// kernel: tpu_custom_call.1
$region0: #{tpu_custom_call.1}
  #allocation0 [shape = 'u32[]', space=smem, size = 0x4, offset = 0x4, fixed_abs, tag = 'smem constant byte address 0x4 - core index']
  #allocation1 [shape = 'u32[144,128]{1,0:T(1,128)}', space=vmem, size = 0x12000, scoped, tag = 'internal scratch']
  %s0 = inlined_call_operand.hbm [shape: f32[2], index: 0, kind: input, shape index: {}]
  %s1 = inlined_call_operand.hbm [shape: f32[32,64], index: 1, kind: input, shape index: {}]
  %s2 = inlined_call_operand.hbm [shape: f32[32,64], index: 2, kind: input, shape index: {}]
  %s3 = inlined_call_operand.hbm [shape: bf16[64,768], index: 3, kind: input, shape index: {}]
  %s4 = inlined_call_operand.hbm [shape: f32[32,64], index: 4, kind: output, shape index: {0}]
  %s5 = inlined_call_operand.hbm [shape: bf16[32,768], index: 5, kind: output, shape index: {1}]
  %6 = xla_tuple %s4, %s5
  %s7 = sld [smem:[#allocation0]]
  $region50: #{tpu_custom_call.1} parent=0
    _
  %s9 = ssub.s32 1, %s7
  %s10 = scalar_select 0, %s9, %s7
  $region1: #{tpu_custom_call.1} parent=0
    #allocation2 [shape = 'u8[512]{0}', space=smem, size = 0x200, scoped, tag = 'input window, operand 0, single buffered']
    #allocation3 [shape = 's32[1]{0}', space=sflag, size = 0x4, scoped, tag = 'scoped memory for tpu_custom_call.1']
    #allocation4 [shape = 's32[1]{0}', space=sflag, size = 0x4, scoped, tag = 'scoped memory for tpu_custom_call.1']
    #allocation5 [shape = 's32[1]{0}', space=sflag, size = 0x4, scoped, tag = 'scoped memory for tpu_custom_call.1']
    #allocation6 [shape = 'u8[16384]{0}', space=vmem, size = 0x4000, scoped, tag = 'input window, operand 1, single buffered']
    #allocation7 [shape = 'u8[16384]{0}', space=vmem, size = 0x4000, scoped, tag = 'input window, operand 2, single buffered']
    #allocation8 [shape = 's32[1]{0}', space=sflag, size = 0x4, scoped, tag = 'scoped memory for tpu_custom_call.1']
    #allocation9 [shape = 'u8[98304]{0}', space=vmem, size = 0x18000, scoped, tag = 'input window, operand 3, single buffered']
    #allocation10 [shape = 'u8[16384]{0}', space=vmem, size = 0x4000, scoped, tag = 'output window, operand 0, single buffered']
    #allocation11 [shape = 'u8[49152]{0}', space=vmem, size = 0xc000, scoped, tag = 'output window, operand 1, single buffered']
    #allocation12 [shape = 's32[1]{0}', space=sflag, size = 0x4, scoped, tag = 'scoped memory for tpu_custom_call.1']
    %11 = vsyncpa [#allocation5], 0
    %12 = vsyncpa [#allocation3], 0
    %13 = vsyncpa [#allocation8], 0
    %14 = vsyncpa [#allocation4], 0
    %15 = vsyncpa [#allocation12], 0
    // Predicated region
    $region2: #{tpu_custom_call.1} parent=1 // pred_check
      _
    $region3: #{tpu_custom_call.1} parent=1 // pred_check_branch
      %17 = sbr.rel (0) target = $region5
    $region4: #{tpu_custom_call.1} parent=1 // pred_region
      %s19 = ssub.s32 16, 16
      %20 = vsyncadd [#allocation5], %s19
      %23 = dma.hbm_to_smem %s0, 16, [#allocation2], [#allocation5]
    $region5: #{tpu_custom_call.1} parent=1 // pred_fallthru
      _
    // Predicated region
    $region6: #{tpu_custom_call.1} parent=1 // pred_check
      _
    $region7: #{tpu_custom_call.1} parent=1 // pred_check_branch
      %25 = sbr.rel (0) target = $region9
    $region8: #{tpu_custom_call.1} parent=1 // pred_region
      %s27 = ssub.s32 512, 512
      %28 = vsyncadd [#allocation3], %s27
      %s29 = sshll.u32 [#allocation6], 4
      %s30 = int_to_ptr.vmem [resolvable:$true] %s29
      %35 = dma.hbm_to_vmem [thread:$0]  %s1, 512, %s30, [#allocation3], 128, 128, 8
    $region9: #{tpu_custom_call.1} parent=1 // pred_fallthru
      _
    // Predicated region
    $region10: #{tpu_custom_call.1} parent=1 // pred_check
      _
    $region11: #{tpu_custom_call.1} parent=1 // pred_check_branch
      %37 = sbr.rel (0) target = $region13
    $region12: #{tpu_custom_call.1} parent=1 // pred_region
      %s39 = ssub.s32 512, 512
      %40 = vsyncadd [#allocation8], %s39
      %s41 = sshll.u32 [#allocation7], 4
      %s42 = int_to_ptr.vmem [resolvable:$true] %s41
      %47 = dma.hbm_to_vmem [thread:$0]  %s2, 512, %s42, [#allocation8], 128, 128, 8
    $region13: #{tpu_custom_call.1} parent=1 // pred_fallthru
      _
    // Predicated region
    $region14: #{tpu_custom_call.1} parent=1 // pred_check
      _
    $region15: #{tpu_custom_call.1} parent=1 // pred_check_branch
      %49 = sbr.rel (0) target = $region17
    $region16: #{tpu_custom_call.1} parent=1 // pred_region
      %s51 = ssub.s32 3072, 3072
      %52 = vsyncadd [#allocation8], %s51
      %s53 = sshll.u32 [#allocation9], 4
      %s54 = int_to_ptr.vmem [resolvable:$true] %s53
      %59 = dma.hbm_to_vmem [thread:$0]  %s3, 3072, %s54, [#allocation8], 384, 384, 24
    $region17: #{tpu_custom_call.1} parent=1 // pred_fallthru
      _
    // Predicated region
    $region18: #{tpu_custom_call.1} parent=1 // pred_check
      _
    $region19: #{tpu_custom_call.1} parent=1 // pred_check_branch
      %61 = sbr.rel (0) target = $region21
    $region20: #{tpu_custom_call.1} parent=1 // pred_region
      %62 = dma.done [#allocation5], 16
    $region21: #{tpu_custom_call.1} parent=1 // pred_fallthru
      _
    // Predicated region
    $region22: #{tpu_custom_call.1} parent=1 // pred_check
      _
    $region23: #{tpu_custom_call.1} parent=1 // pred_check_branch
      %64 = sbr.rel (0) target = $region25
    $region24: #{tpu_custom_call.1} parent=1 // pred_region
      %65 = dma.done [#allocation3], 512
    $region25: #{tpu_custom_call.1} parent=1 // pred_fallthru
      _
    // Predicated region
    $region26: #{tpu_custom_call.1} parent=1 // pred_check
      _
    $region27: #{tpu_custom_call.1} parent=1 // pred_check_branch
      %67 = sbr.rel (0) target = $region29
    $region28: #{tpu_custom_call.1} parent=1 // pred_region
      %68 = dma.done [#allocation8], 512
    $region29: #{tpu_custom_call.1} parent=1 // pred_fallthru
      _
    // Predicated region
    $region30: #{tpu_custom_call.1} parent=1 // pred_check
      _
    $region31: #{tpu_custom_call.1} parent=1 // pred_check_branch
      %70 = sbr.rel (0) target = $region33
    $region32: #{tpu_custom_call.1} parent=1 // pred_region
      %71 = dma.done [#allocation8], 3072
    $region33: #{tpu_custom_call.1} parent=1 // pred_fallthru
      _
    %72 = sfence
    %s74 = sld [smem:[#allocation2]]
    %v75 = vld [vmem:[#allocation6] sm:$0xff]
    %v76 = vld [vmem:[#allocation6 + $0x8] sm:$0xff]
    %v77 = vld [vmem:[#allocation6 + $0x10] sm:$0xff]
    %v78 = vld [vmem:[#allocation6 + $0x18] sm:$0xff]
    %v79 = vstv %s74
    %v80 = vmul.f32 %v79, %v75
    %v81 = vmul.f32 %v79, %v76
    %v82 = vmul.f32 %v79, %v77
    %v83 = vmul.f32 %v79, %v78
    %s84 = sld [smem:[#allocation2 + $0x1]]
    %v85 = vld [vmem:[#allocation7] sm:$0xff]
    %v86 = vld [vmem:[#allocation7 + $0x8] sm:$0xff]
    %v87 = vld [vmem:[#allocation7 + $0x10] sm:$0xff]
    %v88 = vld [vmem:[#allocation7 + $0x18] sm:$0xff]
    %v89 = vstv %s84
    %v90 = vmul.f32 %v89, %v85
    %v91 = vmul.f32 %v89, %v86
    %v92 = vmul.f32 %v89, %v87
    %v93 = vmul.f32 %v89, %v88
    %v94 = vadd.f32 %v80, %v90
    %v95 = vadd.f32 %v81, %v91
    %v96 = vadd.f32 %v82, %v92
    %v97 = vadd.f32 %v83, %v93
    %vm98 = vcmask 523264
    %99 = vst.msk [vmem:[#allocation10] sm:$0xff] %vm98, %v94
    %100 = vst.msk [vmem:[#allocation10 + $0x8] sm:$0xff] %vm98, %v95
    %101 = vst.msk [vmem:[#allocation10 + $0x10] sm:$0xff] %vm98, %v96
    %102 = vst.msk [vmem:[#allocation10 + $0x18] sm:$0xff] %vm98, %v97
    %v103 = vmul.f32 %v94, %v94
    %v104 = vmul.f32 %v95, %v95
    %v105 = vmul.f32 %v96, %v96
    %v106 = vmul.f32 %v97, %v97
    %v107 = vsel %vm98, %v103, 0.0
    %108 = vadd.xlane.f32.xlu0 %v107
    %v109 = vpop.xlane.xlu0 %108
    %v110 = vsel %vm98, %v104, 0.0
    %111 = vadd.xlane.f32.xlu0 %v110
    %v112 = vpop.xlane.xlu0 %111
    %v113 = vsel %vm98, %v105, 0.0
    %114 = vadd.xlane.f32.xlu0 %v113
    %v115 = vpop.xlane.xlu0 %114
    %v116 = vsel %vm98, %v106, 0.0
    %117 = vadd.xlane.f32.xlu0 %v116
    %v118 = vpop.xlane.xlu0 %117
    %v119 = vrcp.pop 64.0
    %v120 = vmul.f32 %v109, %v119
    %v121 = vmul.f32 %v112, %v119
    %v122 = vmul.f32 %v115, %v119
    %v123 = vmul.f32 %v118, %v119
    %v124 = vadd.f32 %v120, 1.1920929e-07
    %v125 = vadd.f32 %v121, 1.1920929e-07
    %v126 = vadd.f32 %v122, 1.1920929e-07
    %v127 = vadd.f32 %v123, 1.1920929e-07
    %v128 = vrsqrt.pop %v124
    %v129 = vrsqrt.pop %v125
    %v130 = vrsqrt.pop %v126
    %v131 = vrsqrt.pop %v127
    %v132 = vmul.f32 %v94, %v128
    %v133 = vmul.f32 %v95, %v129
    %v134 = vmul.f32 %v96, %v130
    %v135 = vmul.f32 %v97, %v131
    %v136 = vpack.c.bf16 %v133, %v132
    %v137 = vpack.c.bf16 %v135, %v134
    %v138 = vld [vmem:[#allocation9] sm:$0xff]
    %v139 = vld [vmem:[#allocation9 + $0x8] sm:$0xff]
    %v140 = vld [vmem:[#allocation9 + $0x10] sm:$0xff]
    %v141 = vld [vmem:[#allocation9 + $0x18] sm:$0xff]
    %v142 = vld [vmem:[#allocation9 + $0x20] sm:$0xff]
    %v143 = vld [vmem:[#allocation9 + $0x28] sm:$0xff]
    %v144 = vld [vmem:[#allocation9 + $0x30] sm:$0xff]
    %v145 = vld [vmem:[#allocation9 + $0x38] sm:$0xff]
    %v146 = vld [vmem:[#allocation9 + $0x40] sm:$0xff]
    %v147 = vld [vmem:[#allocation9 + $0x48] sm:$0xff]
    %v148 = vld [vmem:[#allocation9 + $0x50] sm:$0xff]
    %v149 = vld [vmem:[#allocation9 + $0x58] sm:$0xff]
    %v150 = vld [vmem:[#allocation9 + $0x60] sm:$0xff]
    %v151 = vld [vmem:[#allocation9 + $0x68] sm:$0xff]
    %v152 = vld [vmem:[#allocation9 + $0x70] sm:$0xff]
    %v153 = vld [vmem:[#allocation9 + $0x78] sm:$0xff]
    %v154 = vld [vmem:[#allocation9 + $0x80] sm:$0xff]
    %v155 = vld [vmem:[#allocation9 + $0x88] sm:$0xff]
    %v156 = vld [vmem:[#allocation9 + $0x90] sm:$0xff]
    %v157 = vld [vmem:[#allocation9 + $0x98] sm:$0xff]
    %v158 = vld [vmem:[#allocation9 + $0xa0] sm:$0xff]
    %v159 = vld [vmem:[#allocation9 + $0xa8] sm:$0xff]
    %v160 = vld [vmem:[#allocation9 + $0xb0] sm:$0xff]
    %v161 = vld [vmem:[#allocation9 + $0xb8] sm:$0xff]
    %v186 = vunpack.c.l.b16 %v138
    %v187 = vunpack.c.h.b16 %v138
    %v188 = vunpack.c.l.b16 %v139
    %v189 = vunpack.c.h.b16 %v139
    %v190 = vunpack.c.l.b16 %v140
    %v191 = vunpack.c.h.b16 %v140
    %v192 = vunpack.c.l.b16 %v141
    %v193 = vunpack.c.h.b16 %v141
    %v194 = vunpack.c.l.b16 %v142
    %v195 = vunpack.c.h.b16 %v142
    %v196 = vunpack.c.l.b16 %v143
    %v197 = vunpack.c.h.b16 %v143
    %v198 = vunpack.c.l.b16 %v144
    %v199 = vunpack.c.h.b16 %v144
    %v200 = vunpack.c.l.b16 %v145
    %v201 = vunpack.c.h.b16 %v145
    %v202 = vunpack.c.l.b16 %v146
    %v203 = vunpack.c.h.b16 %v146
    %v204 = vunpack.c.l.b16 %v147
    %v205 = vunpack.c.h.b16 %v147
    %v206 = vunpack.c.l.b16 %v148
    %v207 = vunpack.c.h.b16 %v148
    %v208 = vunpack.c.l.b16 %v149
    %v209 = vunpack.c.h.b16 %v149
    %v210 = vunpack.c.l.b16 %v150
    %v211 = vunpack.c.h.b16 %v150
    %v212 = vunpack.c.l.b16 %v151
    %v213 = vunpack.c.h.b16 %v151
    %v214 = vunpack.c.l.b16 %v152
    %v215 = vunpack.c.h.b16 %v152
    %v216 = vunpack.c.l.b16 %v153
    %v217 = vunpack.c.h.b16 %v153
    %v218 = vunpack.c.l.b16 %v154
    %v219 = vunpack.c.h.b16 %v154
    %v220 = vunpack.c.l.b16 %v155
    %v221 = vunpack.c.h.b16 %v155
    %v222 = vunpack.c.l.b16 %v156
    %v223 = vunpack.c.h.b16 %v156
    %v224 = vunpack.c.l.b16 %v157
    %v225 = vunpack.c.h.b16 %v157
    %v226 = vunpack.c.l.b16 %v158
    %v227 = vunpack.c.h.b16 %v158
    %v228 = vunpack.c.l.b16 %v159
    %v229 = vunpack.c.h.b16 %v159
    %v230 = vunpack.c.l.b16 %v160
    %v231 = vunpack.c.h.b16 %v160
    %v232 = vunpack.c.l.b16 %v161
    %v233 = vunpack.c.h.b16 %v161
    %v234 = vpack.c.b16 %v192, %v186
    %v235 = vpack.c.b16 %v193, %v187
    %v236 = vpack.c.b16 %v194, %v188
    %v237 = vpack.c.b16 %v195, %v189
    %v238 = vpack.c.b16 %v196, %v190
    %v239 = vpack.c.b16 %v197, %v191
    %v240 = vpack.c.b16 %v204, %v198
    %v241 = vpack.c.b16 %v205, %v199
    %v242 = vpack.c.b16 %v206, %v200
    %v243 = vpack.c.b16 %v207, %v201
    %v244 = vpack.c.b16 %v208, %v202
    %v245 = vpack.c.b16 %v209, %v203
    %v246 = vpack.c.b16 %v216, %v210
    %v247 = vpack.c.b16 %v217, %v211
    %v248 = vpack.c.b16 %v218, %v212
    %v249 = vpack.c.b16 %v219, %v213
    %v250 = vpack.c.b16 %v220, %v214
    %v251 = vpack.c.b16 %v221, %v215
    %v252 = vpack.c.b16 %v228, %v222
    %v253 = vpack.c.b16 %v229, %v223
    %v254 = vpack.c.b16 %v230, %v224
    %v255 = vpack.c.b16 %v231, %v225
    %v256 = vpack.c.b16 %v232, %v226
    %v257 = vpack.c.b16 %v233, %v227
    %v283 = vsel %vm98, %v136, 0
    %v286 = vsel %vm98, %v137, 0
    %288 = vmatprep.subr.bf16.mxu0 %v235
    %289 = vmatpush1.bf16.msra.mxu0 %v234
    %290 = vmatprep.subr.bf16.mxu0 %v241
    %291 = vmatpush1.bf16.msra.mxu0 %v240
    %292 = vmatprep.subr.bf16.mxu0 %v247
    %293 = vmatpush1.bf16.msra.mxu0 %v246
    %294 = vmatprep.subr.bf16.mxu0 %v253
    %295 = vmatpush1.bf16.msra.mxu0 %v252
    %296 = vmatprep.subr.bf16.mxu0 0
    %297 = vmatpush1.bf16.msra.mxu0 0
    %298 = vmatprep.subr.bf16.mxu0 0
    %299 = vmatpush1.bf16.msra.mxu0 0
    %300 = vmatprep.subr.bf16.mxu0 0
    %301 = vmatpush1.bf16.msra.mxu0 0
    %302 = vmatprep.subr.bf16.mxu0 0
    %303 = vmatpush1.bf16.msra.mxu0 0
    %304 = vmatprep.subr.bf16.mxu0 0
    %305 = vmatpush1.bf16.msra.mxu0 0
    %306 = vmatprep.subr.bf16.mxu0 0
    %307 = vmatpush1.bf16.msra.mxu0 0
    %308 = vmatprep.subr.bf16.mxu0 0
    %309 = vmatpush1.bf16.msra.mxu0 0
    %310 = vmatprep.subr.bf16.mxu0 0
    %311 = vmatpush1.bf16.msra.mxu0 0
    %312 = vmatprep.subr.bf16.mxu0 0
    %313 = vmatpush1.bf16.msra.mxu0 0
    %314 = vmatprep.subr.bf16.mxu0 0
    %315 = vmatpush1.bf16.msra.mxu0 0
    %316 = vmatprep.subr.bf16.mxu0 0
    %317 = vmatpush1.bf16.msra.mxu0 0
    %318 = vmatprep.subr.bf16.mxu0 0
    %319 = vmatpush1.bf16.msra.mxu0 0
    %320 = vmatprep.mubr.bf16.mxu0 0
    %321 = vmatmul.mubr.bf16.gmra.mrb[0].mxu0 %v283
    %v322 = vpop.f32.mrb[0].mxu0
    %v323 = vadd.f32 0.0, %v322
    %v324 = vpop.f32.mrb[0].mxu0
    %v325 = vadd.f32 0.0, %v324
    %v326 = vpop.f32.mrb[0].mxu0
    %v327 = vadd.f32 0.0, %v326
    %v328 = vpop.f32.mrb[0].mxu0
    %v329 = vadd.f32 0.0, %v328
    %330 = vmatprep.mubr.bf16.mxu0 0
    %331 = vmatmul.mubr.bf16.gmra.mrb[0].mxu0 %v286
    %v332 = vpop.f32.mrb[0].mxu0
    %v333 = vadd.f32 0.0, %v332
    %v334 = vpop.f32.mrb[0].mxu0
    %v335 = vadd.f32 0.0, %v334
    %v336 = vpop.f32.mrb[0].mxu0
    %v337 = vadd.f32 0.0, %v336
    %v338 = vpop.f32.mrb[0].mxu0
    %v339 = vadd.f32 0.0, %v338
    %340 = vdwg.mxu0
    %341 = vmatprep.subr.bf16.mxu0 %v237
    %342 = vmatpush1.bf16.msra.mxu0 %v236
    %343 = vmatprep.subr.bf16.mxu0 %v243
    %344 = vmatpush1.bf16.msra.mxu0 %v242
    %345 = vmatprep.subr.bf16.mxu0 %v249
    %346 = vmatpush1.bf16.msra.mxu0 %v248
    %347 = vmatprep.subr.bf16.mxu0 %v255
    %348 = vmatpush1.bf16.msra.mxu0 %v254
    %349 = vmatprep.subr.bf16.mxu0 0
    %350 = vmatpush1.bf16.msra.mxu0 0
    %351 = vmatprep.subr.bf16.mxu0 0
    %352 = vmatpush1.bf16.msra.mxu0 0
    %353 = vmatprep.subr.bf16.mxu0 0
    %354 = vmatpush1.bf16.msra.mxu0 0
    %355 = vmatprep.subr.bf16.mxu0 0
    %356 = vmatpush1.bf16.msra.mxu0 0
    %357 = vmatprep.subr.bf16.mxu0 0
    %358 = vmatpush1.bf16.msra.mxu0 0
    %359 = vmatprep.subr.bf16.mxu0 0
    %360 = vmatpush1.bf16.msra.mxu0 0
    %361 = vmatprep.subr.bf16.mxu0 0
    %362 = vmatpush1.bf16.msra.mxu0 0
    %363 = vmatprep.subr.bf16.mxu0 0
    %364 = vmatpush1.bf16.msra.mxu0 0
    %365 = vmatprep.subr.bf16.mxu0 0
    %366 = vmatpush1.bf16.msra.mxu0 0
    %367 = vmatprep.subr.bf16.mxu0 0
    %368 = vmatpush1.bf16.msra.mxu0 0
    %369 = vmatprep.subr.bf16.mxu0 0
    %370 = vmatpush1.bf16.msra.mxu0 0
    %371 = vmatprep.subr.bf16.mxu0 0
    %372 = vmatpush1.bf16.msra.mxu0 0
    %373 = vmatprep.mubr.bf16.mxu0 0
    %374 = vmatmul.mubr.bf16.gmra.mrb[0].mxu0 %v283
    %v375 = vpop.f32.mrb[0].mxu0
    %v376 = vadd.f32 0.0, %v375
    %v377 = vpop.f32.mrb[0].mxu0
    %v378 = vadd.f32 0.0, %v377
    %v379 = vpop.f32.mrb[0].mxu0
    %v380 = vadd.f32 0.0, %v379
    %v381 = vpop.f32.mrb[0].mxu0
    %v382 = vadd.f32 0.0, %v381
    %383 = vmatprep.mubr.bf16.mxu0 0
    %384 = vmatmul.mubr.bf16.gmra.mrb[0].mxu0 %v286
    %v385 = vpop.f32.mrb[0].mxu0
    %v386 = vadd.f32 0.0, %v385
    %v387 = vpop.f32.mrb[0].mxu0
    %v388 = vadd.f32 0.0, %v387
    %v389 = vpop.f32.mrb[0].mxu0
    %v390 = vadd.f32 0.0, %v389
    %v391 = vpop.f32.mrb[0].mxu0
    %v392 = vadd.f32 0.0, %v391
    %393 = vdwg.mxu0
    %394 = vmatprep.subr.bf16.mxu0 %v239
    %395 = vmatpush1.bf16.msra.mxu0 %v238
    %396 = vmatprep.subr.bf16.mxu0 %v245
    %397 = vmatpush1.bf16.msra.mxu0 %v244
    %398 = vmatprep.subr.bf16.mxu0 %v251
    %399 = vmatpush1.bf16.msra.mxu0 %v250
    %400 = vmatprep.subr.bf16.mxu0 %v257
    %401 = vmatpush1.bf16.msra.mxu0 %v256
    %402 = vmatprep.subr.bf16.mxu0 0
    %403 = vmatpush1.bf16.msra.mxu0 0
    %404 = vmatprep.subr.bf16.mxu0 0
    %405 = vmatpush1.bf16.msra.mxu0 0
    %406 = vmatprep.subr.bf16.mxu0 0
    %407 = vmatpush1.bf16.msra.mxu0 0
    %408 = vmatprep.subr.bf16.mxu0 0
    %409 = vmatpush1.bf16.msra.mxu0 0
    %410 = vmatprep.subr.bf16.mxu0 0
    %411 = vmatpush1.bf16.msra.mxu0 0
    %412 = vmatprep.subr.bf16.mxu0 0
    %413 = vmatpush1.bf16.msra.mxu0 0
    %414 = vmatprep.subr.bf16.mxu0 0
    %415 = vmatpush1.bf16.msra.mxu0 0
    %416 = vmatprep.subr.bf16.mxu0 0
    %417 = vmatpush1.bf16.msra.mxu0 0
    %418 = vmatprep.subr.bf16.mxu0 0
    %419 = vmatpush1.bf16.msra.mxu0 0
    %420 = vmatprep.subr.bf16.mxu0 0
    %421 = vmatpush1.bf16.msra.mxu0 0
    %422 = vmatprep.subr.bf16.mxu0 0
    %423 = vmatpush1.bf16.msra.mxu0 0
    %424 = vmatprep.subr.bf16.mxu0 0
    %425 = vmatpush1.bf16.msra.mxu0 0
    %426 = vmatprep.mubr.bf16.mxu0 0
    %427 = vmatmul.mubr.bf16.gmra.mrb[0].mxu0 %v283
    %v428 = vpop.f32.mrb[0].mxu0
    %v429 = vadd.f32 0.0, %v428
    %v430 = vpop.f32.mrb[0].mxu0
    %v431 = vadd.f32 0.0, %v430
    %v432 = vpop.f32.mrb[0].mxu0
    %v433 = vadd.f32 0.0, %v432
    %v434 = vpop.f32.mrb[0].mxu0
    %v435 = vadd.f32 0.0, %v434
    %436 = vmatprep.mubr.bf16.mxu0 0
    %437 = vmatmul.mubr.bf16.gmra.mrb[0].mxu0 %v286
    %v438 = vpop.f32.mrb[0].mxu0
    %v439 = vadd.f32 0.0, %v438
    %v440 = vpop.f32.mrb[0].mxu0
    %v441 = vadd.f32 0.0, %v440
    %v442 = vpop.f32.mrb[0].mxu0
    %v443 = vadd.f32 0.0, %v442
    %v444 = vpop.f32.mrb[0].mxu0
    %v445 = vadd.f32 0.0, %v444
    %446 = vdwg.mxu0
    %v447 = vpack.c.bf16 %v327, %v323
    %v448 = vpack.c.bf16 %v329, %v325
    %v449 = vpack.c.bf16 %v380, %v376
    %v450 = vpack.c.bf16 %v382, %v378
    %v451 = vpack.c.bf16 %v433, %v429
    %v452 = vpack.c.bf16 %v435, %v431
    %v453 = vpack.c.bf16 %v337, %v333
    %v454 = vpack.c.bf16 %v339, %v335
    %v455 = vpack.c.bf16 %v390, %v386
    %v456 = vpack.c.bf16 %v392, %v388
    %v457 = vpack.c.bf16 %v443, %v439
    %v458 = vpack.c.bf16 %v445, %v441
    %v471 = vunpack.c.l.b16 %v447
    %v472 = vunpack.c.l.b16 %v448
    %v473 = vunpack.c.l.b16 %v449
    %v474 = vunpack.c.l.b16 %v450
    %v475 = vunpack.c.l.b16 %v451
    %v476 = vunpack.c.l.b16 %v452
    %v477 = vunpack.c.h.b16 %v447
    %v478 = vunpack.c.h.b16 %v448
    %v479 = vunpack.c.h.b16 %v449
    %v480 = vunpack.c.h.b16 %v450
    %v481 = vunpack.c.h.b16 %v451
    %v482 = vunpack.c.h.b16 %v452
    %v483 = vunpack.c.l.b16 %v453
    %v484 = vunpack.c.l.b16 %v454
    %v485 = vunpack.c.l.b16 %v455
    %v486 = vunpack.c.l.b16 %v456
    %v487 = vunpack.c.l.b16 %v457
    %v488 = vunpack.c.l.b16 %v458
    %v489 = vunpack.c.h.b16 %v453
    %v490 = vunpack.c.h.b16 %v454
    %v491 = vunpack.c.h.b16 %v455
    %v492 = vunpack.c.h.b16 %v456
    %v493 = vunpack.c.h.b16 %v457
    %v494 = vunpack.c.h.b16 %v458
    %v495 = vpack.c.b16 %v472, %v471
    %v496 = vpack.c.b16 %v474, %v473
    %v497 = vpack.c.b16 %v476, %v475
    %v498 = vpack.c.b16 %v478, %v477
    %v499 = vpack.c.b16 %v480, %v479
    %v500 = vpack.c.b16 %v482, %v481
    %v501 = vpack.c.b16 %v484, %v483
    %v502 = vpack.c.b16 %v486, %v485
    %v503 = vpack.c.b16 %v488, %v487
    %v504 = vpack.c.b16 %v490, %v489
    %v505 = vpack.c.b16 %v492, %v491
    %v506 = vpack.c.b16 %v494, %v493
    %519 = vst [vmem:[#allocation11] sm:$0xff] %v495
    %520 = vst [vmem:[#allocation11 + $0x8] sm:$0xff] %v496
    %521 = vst [vmem:[#allocation11 + $0x10] sm:$0xff] %v497
    %522 = vst [vmem:[#allocation11 + $0x18] sm:$0xff] %v498
    %523 = vst [vmem:[#allocation11 + $0x20] sm:$0xff] %v499
    %524 = vst [vmem:[#allocation11 + $0x28] sm:$0xff] %v500
    %525 = vst [vmem:[#allocation11 + $0x30] sm:$0xff] %v501
    %526 = vst [vmem:[#allocation11 + $0x38] sm:$0xff] %v502
    %527 = vst [vmem:[#allocation11 + $0x40] sm:$0xff] %v503
    %528 = vst [vmem:[#allocation11 + $0x48] sm:$0xff] %v504
    %529 = vst [vmem:[#allocation11 + $0x50] sm:$0xff] %v505
    %530 = vst [vmem:[#allocation11 + $0x58] sm:$0xff] %v506
    // Predicated region
    $region34: #{tpu_custom_call.1} parent=1 // pred_check
      _
    $region35: #{tpu_custom_call.1} parent=1 // pred_check_branch
      %532 = sbr.rel (0) target = $region37
    $region36: #{tpu_custom_call.1} parent=1 // pred_region
      %s534 = ssub.s32 512, 512
      %535 = vsyncadd [#allocation4], %s534
      %s536 = sshll.u32 [#allocation10], 4
      %s537 = int_to_ptr.vmem [resolvable:$true] %s536
      %542 = dma.vmem_to_hbm [thread:$0]  %s537, 512, %s4, [#allocation4], 128, 128, 8
    $region37: #{tpu_custom_call.1} parent=1 // pred_fallthru
      _
    // Predicated region
    $region38: #{tpu_custom_call.1} parent=1 // pred_check
      _
    $region39: #{tpu_custom_call.1} parent=1 // pred_check_branch
      %544 = sbr.rel (0) target = $region41
    $region40: #{tpu_custom_call.1} parent=1 // pred_region
      %s546 = ssub.s32 1536, 1536
      %547 = vsyncadd [#allocation12], %s546
      %s548 = sshll.u32 [#allocation11], 4
      %s549 = int_to_ptr.vmem [resolvable:$true] %s548
      %554 = dma.vmem_to_hbm [thread:$0]  %s549, 1536, %s5, [#allocation12], 384, 384, 24
    $region41: #{tpu_custom_call.1} parent=1 // pred_fallthru
      _
    // Predicated region
    $region42: #{tpu_custom_call.1} parent=1 // pred_check
      _
    $region43: #{tpu_custom_call.1} parent=1 // pred_check_branch
      %556 = sbr.rel (0) target = $region45
    $region44: #{tpu_custom_call.1} parent=1 // pred_region
      %557 = dma.done [#allocation4], 512
    $region45: #{tpu_custom_call.1} parent=1 // pred_fallthru
      _
    // Predicated region
    $region46: #{tpu_custom_call.1} parent=1 // pred_check
      _
    $region47: #{tpu_custom_call.1} parent=1 // pred_check_branch
      %559 = sbr.rel (0) target = $region49
    $region48: #{tpu_custom_call.1} parent=1 // pred_region
      %560 = dma.done [#allocation12], 1536
    $region49: #{tpu_custom_call.1} parent=1 // pred_fallthru
      _
    %561 = vsyncpa [#allocation3], 1
    %562 = vsyncpa [#allocation8], 1
    %563 = vsyncpa [#allocation4], 1
    %564 = vsyncpa [#allocation12], 1
    %565 = vsyncpa [#allocation5], 1

</llo_original>
